<compile_context>
chip_gen: v7x
topology: tpu7x:2x2x1
jax: 0.10.0
libtpu: 0.0.40
codegen_flags: <defaults>
</compile_context>

<pallas_src>
import functools

import jax
import jax.numpy as jnp
from jax import lax
from jax.experimental import pallas as pl
from jax.experimental.pallas import tpu as pltpu


_INV_SQRT2 = 0.7071067811865476


# ---------------------------------------------------------------------------
# In-kernel math helpers (VPU/EUP-safe: mul/add/exp/where/select only).
# ---------------------------------------------------------------------------
def _erf_poly(z):
    """erf(z) via Abramowitz & Stegun 7.1.26, |abs error| < 1.5e-7."""
    a1, a2, a3, a4, a5 = (0.254829592, -0.284496736, 1.421413741,
                          -1.453152027, 1.061405429)
    p = 0.3275911
    az = jnp.abs(z)
    t = 1.0 / (1.0 + p * az)
    poly = ((((a5 * t + a4) * t + a3) * t + a2) * t + a1) * t
    y = 1.0 - poly * jnp.exp(-(az * az))
    return jnp.where(z < 0.0, -y, y)


def _gelu_exact(x):
    return 0.5 * x * (1.0 + _erf_poly(x * _INV_SQRT2))


def _sigmoid(x):
    return 1.0 / (1.0 + jnp.exp(-x))


def _excite(csum, pool_ref, w1_ref, b1_ref, w2_ref, b2_ref, scat_ref):
    """csum: (1, FW) f32 raw channel-sum  ->  (1, FW) f32 per-lane excitation.

    pool_ref (FW, F) has the 1/(C*W) normalisation folded in, so
    csum @ pool == mean over (C, W).  scat_ref (F, FW) broadcasts the
    per-frequency sigmoid back onto the merged (F*W) lanes.  All matmuls are
    tiny 1-row MXU ops; the op stays HBM-bandwidth bound.
    """
    pooled = jnp.dot(csum, pool_ref[...], preferred_element_type=jnp.float32)       # (1, F)
    h = jnp.dot(pooled, w1_ref[...], preferred_element_type=jnp.float32) + b1_ref[...]
    h = _gelu_exact(h)
    s = _sigmoid(jnp.dot(h, w2_ref[...], preferred_element_type=jnp.float32) + b2_ref[...])  # (1, F)
    return jnp.dot(s, scat_ref[...], preferred_element_type=jnp.float32)            # (1, FW)


# ---------------------------------------------------------------------------
# Fused single-pass kernel: reduce + MLP + scale on one (1, C, FW) slab.
# ---------------------------------------------------------------------------
def _fused_kernel(x_ref, pool_ref, w1_ref, b1_ref, w2_ref, b2_ref, scat_ref, o_ref):
    xf = x_ref[...].astype(jnp.float32)                    # (1, C, FW)
    csum = jnp.sum(xf, axis=1)                             # (1, FW) f32
    s_fw = _excite(csum, pool_ref, w1_ref, b1_ref, w2_ref, b2_ref, scat_ref)
    o_ref[...] = (xf * s_fw[:, None, :]).astype(o_ref.dtype)


# ---------------------------------------------------------------------------
# Fallback phase 1: C-tiled reduction + excitation epilogue.
#   output: s_fw (B, 1, FW) f32, written only at the last C-tile.
# ---------------------------------------------------------------------------
def _reduce_excite_kernel(x_ref, pool_ref, w1_ref, b1_ref, w2_ref, b2_ref,
                          scat_ref, s_ref, acc_ref, *, c_total):
    ci = pl.program_id(1)
    c_tile = x_ref.shape[1]

    @pl.when(ci == 0)
    def _():
        acc_ref[...] = jnp.zeros_like(acc_ref)

    xf = x_ref[...].astype(jnp.float32)                    # (1, c_tile, FW)
    if c_total % c_tile != 0:
        # mask the tail tile (garbage rows past C must not enter the sum)
        row = lax.broadcasted_iota(jnp.int32, xf.shape, 1)
        xf = jnp.where(row + ci * c_tile < c_total, xf, 0.0)
    acc_ref[...] += jnp.sum(xf, axis=1)                    # (1, FW)

    @pl.when(ci == pl.num_programs(1) - 1)
    def _():
        s_fw = _excite(acc_ref[...], pool_ref, w1_ref, b1_ref,
                       w2_ref, b2_ref, scat_ref)           # (1, FW)
        s_ref[...] = s_fw[:, None, :]                      # (1, 1, FW)


# ---------------------------------------------------------------------------
# Fallback phase 2: lane-dense elementwise scaling.
# ---------------------------------------------------------------------------
def _scale_kernel(s_ref, x_ref, o_ref):
    # s_ref: (1, 1, FW) f32; x_ref / o_ref: (1, c_tile, FW)
    o_ref[...] = (x_ref[...].astype(jnp.float32) * s_ref[...]).astype(o_ref.dtype)


# ---------------------------------------------------------------------------
# Sizing helpers (dtype- and generation-aware).
# ---------------------------------------------------------------------------
def _round_up(v, m):
    return ((v + m - 1) // m) * m


def _padded2d_bytes(shape, itemsize):
    r, c = shape
    return _round_up(r, 8) * _round_up(c, 128) * itemsize


def _vmem_capacity_bytes():
    try:
        cap = getattr(pltpu.get_tpu_info(), "vmem_capacity_bytes", None)
        if cap:
            return int(cap)
    except Exception:
        pass
    return 64 * 1024 * 1024  # conservative (v7x); v5e/v6e have 128 MiB


def _vmem_limit(need, cap):
    return int(min(int(0.9 * cap), max(32 * 1024 * 1024, 2 * need)))


# ---------------------------------------------------------------------------
# Wrapper
# ---------------------------------------------------------------------------
def fwse_module(x, w1, b1, w2, b2):
    """x: (B, C, F, W) NCHW.  w1: (Bn, F), b1: (Bn,), w2: (F, Bn), b2: (F,)."""
    B, C, F, W = x.shape
    FW = F * W
    Bn = w1.shape[0]
    x2 = x.reshape(B, C, FW)  # contiguous trailing-dim merge: free, no HBM pass

    f32 = jnp.float32
    # tiny excitation constants: mean-pool matrix with 1/(C*W) folded in, the
    # per-frequency scatter matrix, and the k=1 conv weights as (in, out) mats.
    eye = jnp.eye(F, dtype=f32)
    pool = jnp.repeat(eye, W, axis=0) * (1.0 / float(C * W))   # (FW, F)
    scat = jnp.repeat(eye, W, axis=1)                           # (F, FW)
    w1t = w1.astype(f32).T                                      # (F, Bn)
    b1r = b1.astype(f32).reshape(1, Bn)
    w2t = w2.astype(f32).T                                      # (Bn, F)
    b2r = b2.astype(f32).reshape(1, F)
    small_in = (pool, w1t, b1r, w2t, b2r, scat)
    small_shapes = [a.shape for a in small_in]

    itemsize = x.dtype.itemsize
    fw_pad = _round_up(FW, 128)
    c_pad = _round_up(C, 8)
    slab_in = c_pad * fw_pad * itemsize              # one (1, C, FW) block, padded
    slab_f32 = c_pad * fw_pad * 4
    w_bytes = 2 * sum(_padded2d_bytes(s, 4) for s in small_shapes)  # double-buffered

    vmem_cap = _vmem_capacity_bytes()
    big_budget = int(0.45 * vmem_cap)                # headroom for temps / pipeline

    # ---- fused single-pass path --------------------------------------------
    # 2x (in) + 2x (out) double-buffered slabs + ~2 f32 temps + small weights.
    fused_need = 4 * slab_in + 2 * slab_f32 + w_bytes
    if fused_need <= big_budget:
        zero1 = lambda b: (0, 0)
        out2 = pl.pallas_call(
            _fused_kernel,
            out_shape=jax.ShapeDtypeStruct((B, C, FW), x.dtype),
            grid_spec=pltpu.PrefetchScalarGridSpec(
                num_scalar_prefetch=0,
                grid=(B,),
                in_specs=[pl.BlockSpec((1, C, FW), lambda b: (b, 0, 0))]
                         + [pl.BlockSpec(s, zero1) for s in small_shapes],
                out_specs=pl.BlockSpec((1, C, FW), lambda b: (b, 0, 0)),
            ),
            compiler_params=pltpu.CompilerParams(
                dimension_semantics=("parallel",),
                vmem_limit_bytes=_vmem_limit(fused_need, vmem_cap)),
        )(x2, *small_in)
        return out2.reshape(B, C, F, W)

    # ---- two-phase fallback (slab too large for VMEM) ----------------------
    # largest multiple-of-8 channel tile that fits the budget (dtype-aware)
    per_row = fw_pad * (4 * itemsize + 2 * 4)        # 4 dbuf copies + 2 f32 temps
    avail = max(big_budget - w_bytes, 8 * per_row)
    c_tile = min(c_pad, max(8, (avail // per_row) // 8 * 8))
    if c_tile >= C:
        c_tile = C
    n_ct = pl.cdiv(C, c_tile)
    c_tile_pad = _round_up(c_tile, 8)
    need2 = 4 * c_tile_pad * fw_pad * itemsize + 2 * c_tile_pad * fw_pad * 4 + w_bytes
    vmem_limit2 = _vmem_limit(need2, vmem_cap)
    zero2 = lambda b, ci: (0, 0)

    # phase 1: channel reduction + excitation epilogue -> s_fw (B, 1, FW) f32
    s_fw = pl.pallas_call(
        functools.partial(_reduce_excite_kernel, c_total=C),
        out_shape=jax.ShapeDtypeStruct((B, 1, FW), jnp.float32),
        grid_spec=pltpu.PrefetchScalarGridSpec(
            num_scalar_prefetch=0,
            grid=(B, n_ct),
            in_specs=[pl.BlockSpec((1, c_tile, FW), lambda b, ci: (b, ci, 0))]
                     + [pl.BlockSpec(s, zero2) for s in small_shapes],
            out_specs=pl.BlockSpec((1, 1, FW), lambda b, ci: (b, 0, 0)),
            scratch_shapes=[pltpu.VMEM((1, FW), jnp.float32)],
        ),
        compiler_params=pltpu.CompilerParams(
            dimension_semantics=("parallel", "arbitrary"),
            vmem_limit_bytes=vmem_limit2),
    )(x2, *small_in)

    # phase 2: elementwise scaling (both axes parallel -> both TCs on v7x)
    out2 = pl.pallas_call(
        _scale_kernel,
        out_shape=jax.ShapeDtypeStruct((B, C, FW), x.dtype),
        grid_spec=pltpu.PrefetchScalarGridSpec(
            num_scalar_prefetch=0,
            grid=(B, n_ct),
            in_specs=[
                pl.BlockSpec((1, 1, FW), lambda b, ci: (b, 0, 0)),
                pl.BlockSpec((1, c_tile, FW), lambda b, ci: (b, ci, 0)),
            ],
            out_specs=pl.BlockSpec((1, c_tile, FW), lambda b, ci: (b, ci, 0)),
        ),
        compiler_params=pltpu.CompilerParams(
            dimension_semantics=("parallel", "parallel"),
            vmem_limit_bytes=vmem_limit2),
    )(s_fw, x2)

    return out2.reshape(B, C, F, W)


def _reference(x, w1, b1, w2, b2):
    """Pure-JAX reference matching the PyTorch forward (exact erf-GELU)."""
    x1 = jnp.swapaxes(x, -3, -2)                       # (B, F, C, W)
    p = jnp.mean(x1, axis=(-2, -1))                    # (B, F)
    h = p @ w1.T + b1
    h = 0.5 * h * (1.0 + lax.erf(h / jnp.sqrt(2.0)))   # exact GELU
    s = jax.nn.sigmoid(h @ w2.T + b2)                  # (B, F)
    out = x1 * s[:, :, None, None]
    return jnp.swapaxes(out, -3, -2)


if __name__ == "__main__":
    B, C, F, W = 2, 4, 16, 16        # batch, channels, frequency, width
    Bn = 8                           # bottleneck

    key = jax.random.PRNGKey(0)
    kx, k1, k2, k3, k4 = jax.random.split(key, 5)

    x = jax.random.normal(kx, (B, C, F, W), dtype=jnp.float32)
    # Conv1d(frequency->bottleneck, k=1) weights: (Bn, F); Conv1d back: (F, Bn)
    w1 = jax.random.normal(k1, (Bn, F), dtype=jnp.float32) * 0.2
    b1 = jax.random.normal(k2, (Bn,), dtype=jnp.float32) * 0.1
    w2 = jax.random.normal(k3, (F, Bn), dtype=jnp.float32) * 0.2
    b2 = jax.random.normal(k4, (F,), dtype=jnp.float32) * 0.1

    fwse = jax.jit(fwse_module)
    out = jax.block_until_ready(fwse(x, w1, b1, w2, b2))
    ref = jax.block_until_ready(_reference(x, w1, b1, w2, b2))

    assert out.shape == x.shape and out.dtype == x.dtype
    assert jnp.allclose(out, ref, atol=1e-5, rtol=1e-5)
    print("KERNEL_OK")
</pallas_src>

<mosaic_0001>
module attributes {stable_mosaic.version = 11 : i64} {
  func.func @_fused_kernel(%arg0: i32, %arg1: memref<1x4x256xf32, #tpu.memory_space<vmem>>, %arg2: memref<256x16xf32, #tpu.memory_space<vmem>>, %arg3: memref<16x8xf32, #tpu.memory_space<vmem>>, %arg4: memref<1x8xf32, #tpu.memory_space<vmem>>, %arg5: memref<8x16xf32, #tpu.memory_space<vmem>>, %arg6: memref<1x16xf32, #tpu.memory_space<vmem>>, %arg7: memref<16x256xf32, #tpu.memory_space<vmem>>, %arg8: memref<1x4x256xf32, #tpu.memory_space<vmem>>) attributes {dimension_semantics = [#tpu.dimension_semantics<parallel>], iteration_bounds = array<i64: 2>, scalar_prefetch = 0 : i64, scratch_operands = 0 : i64, tpu.core_type = #tpu.core_type<tc>, window_params = [{transform_indices = @transform_0, window_bounds = array<i64: 1, 4, 256>}, {pipeline_mode = #tpu.pipeline_mode<synchronous>, transform_indices = @transform_1, window_bounds = array<i64: 256, 16>}, {pipeline_mode = #tpu.pipeline_mode<synchronous>, transform_indices = @transform_2, window_bounds = array<i64: 16, 8>}, {pipeline_mode = #tpu.pipeline_mode<synchronous>, transform_indices = @transform_3, window_bounds = array<i64: 1, 8>}, {pipeline_mode = #tpu.pipeline_mode<synchronous>, transform_indices = @transform_4, window_bounds = array<i64: 8, 16>}, {pipeline_mode = #tpu.pipeline_mode<synchronous>, transform_indices = @transform_5, window_bounds = array<i64: 1, 16>}, {pipeline_mode = #tpu.pipeline_mode<synchronous>, transform_indices = @transform_6, window_bounds = array<i64: 16, 256>}, {transform_indices = @transform_7, window_bounds = array<i64: 1, 4, 256>}]} {
    %c0 = arith.constant 0 : index
    %c0_0 = arith.constant 0 : index
    %c0_1 = arith.constant 0 : index
    %0 = vector.load %arg1[%c0, %c0_0, %c0_1] : memref<1x4x256xf32, #tpu.memory_space<vmem>>, vector<1x4x256xf32>
    %cst = arith.constant dense<0.000000e+00> : vector<1x256xf32>
    %1 = vector.multi_reduction <add>, %0, %cst [1] : vector<1x4x256xf32> to vector<1x256xf32>
    %c0_2 = arith.constant 0 : index
    %c0_3 = arith.constant 0 : index
    %2 = vector.load %arg2[%c0_2, %c0_3] : memref<256x16xf32, #tpu.memory_space<vmem>>, vector<256x16xf32>
    %cst_4 = arith.constant dense<0.000000e+00> : vector<1x16xf32>
    %3 = tpu.matmul %1, %2, %cst_4 {dimension_numbers = #tpu.dot_dimension_numbers<[1], [0], [0], [1], [0, 0, 1, 1], [], []>} : vector<1x256xf32>, vector<256x16xf32>, vector<1x16xf32> -> vector<1x16xf32>
    %c0_5 = arith.constant 0 : index
    %c0_6 = arith.constant 0 : index
    %4 = vector.load %arg3[%c0_5, %c0_6] : memref<16x8xf32, #tpu.memory_space<vmem>>, vector<16x8xf32>
    %cst_7 = arith.constant dense<0.000000e+00> : vector<1x8xf32>
    %5 = tpu.matmul %3, %4, %cst_7 {dimension_numbers = #tpu.dot_dimension_numbers<[1], [0], [0], [1], [0, 0, 1, 1], [], []>} : vector<1x16xf32>, vector<16x8xf32>, vector<1x8xf32> -> vector<1x8xf32>
    %c0_8 = arith.constant 0 : index
    %c0_9 = arith.constant 0 : index
    %6 = vector.load %arg4[%c0_8, %c0_9] : memref<1x8xf32, #tpu.memory_space<vmem>>, vector<1x8xf32>
    %7 = arith.addf %5, %6 : vector<1x8xf32>
    %cst_10 = arith.constant 5.000000e-01 : f32
    %8 = vector.broadcast %cst_10 : f32 to vector<1x8xf32>
    %9 = arith.mulf %8, %7 : vector<1x8xf32>
    %cst_11 = arith.constant 0.707106769 : f32
    %10 = vector.broadcast %cst_11 : f32 to vector<1x8xf32>
    %11 = arith.mulf %7, %10 : vector<1x8xf32>
    %12 = math.absf %11 : vector<1x8xf32>
    %cst_12 = arith.constant 0.327591091 : f32
    %13 = vector.broadcast %cst_12 : f32 to vector<1x8xf32>
    %14 = arith.mulf %13, %12 : vector<1x8xf32>
    %cst_13 = arith.constant 1.000000e+00 : f32
    %15 = vector.broadcast %cst_13 : f32 to vector<1x8xf32>
    %16 = arith.addf %15, %14 : vector<1x8xf32>
    %cst_14 = arith.constant 1.000000e+00 : f32
    %17 = vector.broadcast %cst_14 : f32 to vector<1x8xf32>
    %18 = arith.divf %17, %16 : vector<1x8xf32>
    %cst_15 = arith.constant 1.06140542 : f32
    %19 = vector.broadcast %cst_15 : f32 to vector<1x8xf32>
    %20 = arith.mulf %19, %18 : vector<1x8xf32>
    %cst_16 = arith.constant -1.45315206 : f32
    %21 = vector.broadcast %cst_16 : f32 to vector<1x8xf32>
    %22 = arith.addf %20, %21 : vector<1x8xf32>
    %23 = arith.mulf %22, %18 : vector<1x8xf32>
    %cst_17 = arith.constant 1.42141378 : f32
    %24 = vector.broadcast %cst_17 : f32 to vector<1x8xf32>
    %25 = arith.addf %23, %24 : vector<1x8xf32>
    %26 = arith.mulf %25, %18 : vector<1x8xf32>
    %cst_18 = arith.constant -0.284496725 : f32
    %27 = vector.broadcast %cst_18 : f32 to vector<1x8xf32>
    %28 = arith.addf %26, %27 : vector<1x8xf32>
    %29 = arith.mulf %28, %18 : vector<1x8xf32>
    %cst_19 = arith.constant 0.254829586 : f32
    %30 = vector.broadcast %cst_19 : f32 to vector<1x8xf32>
    %31 = arith.addf %29, %30 : vector<1x8xf32>
    %32 = arith.mulf %31, %18 : vector<1x8xf32>
    %33 = arith.mulf %12, %12 : vector<1x8xf32>
    %cst_20 = arith.constant 0.000000e+00 : f32
    %34 = vector.broadcast %cst_20 : f32 to vector<1x8xf32>
    %35 = arith.subf %34, %33 : vector<1x8xf32>
    %36 = math.exp %35 : vector<1x8xf32>
    %37 = arith.mulf %32, %36 : vector<1x8xf32>
    %cst_21 = arith.constant 1.000000e+00 : f32
    %38 = vector.broadcast %cst_21 : f32 to vector<1x8xf32>
    %39 = arith.subf %38, %37 : vector<1x8xf32>
    %cst_22 = arith.constant 0.000000e+00 : f32
    %40 = vector.broadcast %cst_22 : f32 to vector<1x8xf32>
    %41 = arith.cmpf olt, %11, %40 : vector<1x8xf32>
    %cst_23 = arith.constant 0.000000e+00 : f32
    %42 = vector.broadcast %cst_23 : f32 to vector<1x8xf32>
    %43 = arith.subf %42, %39 : vector<1x8xf32>
    %44 = arith.select %41, %43, %39 : vector<1x8xi1>, vector<1x8xf32>
    %cst_24 = arith.constant 1.000000e+00 : f32
    %45 = vector.broadcast %cst_24 : f32 to vector<1x8xf32>
    %46 = arith.addf %45, %44 : vector<1x8xf32>
    %47 = arith.mulf %9, %46 : vector<1x8xf32>
    %c0_25 = arith.constant 0 : index
    %c0_26 = arith.constant 0 : index
    %48 = vector.load %arg5[%c0_25, %c0_26] : memref<8x16xf32, #tpu.memory_space<vmem>>, vector<8x16xf32>
    %cst_27 = arith.constant dense<0.000000e+00> : vector<1x16xf32>
    %49 = tpu.matmul %47, %48, %cst_27 {dimension_numbers = #tpu.dot_dimension_numbers<[1], [0], [0], [1], [0, 0, 1, 1], [], []>} : vector<1x8xf32>, vector<8x16xf32>, vector<1x16xf32> -> vector<1x16xf32>
    %c0_28 = arith.constant 0 : index
    %c0_29 = arith.constant 0 : index
    %50 = vector.load %arg6[%c0_28, %c0_29] : memref<1x16xf32, #tpu.memory_space<vmem>>, vector<1x16xf32>
    %51 = arith.addf %49, %50 : vector<1x16xf32>
    %cst_30 = arith.constant 0.000000e+00 : f32
    %52 = vector.broadcast %cst_30 : f32 to vector<1x16xf32>
    %53 = arith.subf %52, %51 : vector<1x16xf32>
    %54 = math.exp %53 : vector<1x16xf32>
    %cst_31 = arith.constant 1.000000e+00 : f32
    %55 = vector.broadcast %cst_31 : f32 to vector<1x16xf32>
    %56 = arith.addf %55, %54 : vector<1x16xf32>
    %cst_32 = arith.constant 1.000000e+00 : f32
    %57 = vector.broadcast %cst_32 : f32 to vector<1x16xf32>
    %58 = arith.divf %57, %56 : vector<1x16xf32>
    %c0_33 = arith.constant 0 : index
    %c0_34 = arith.constant 0 : index
    %59 = vector.load %arg7[%c0_33, %c0_34] : memref<16x256xf32, #tpu.memory_space<vmem>>, vector<16x256xf32>
    %cst_35 = arith.constant dense<0.000000e+00> : vector<1x256xf32>
    %60 = tpu.matmul %58, %59, %cst_35 {dimension_numbers = #tpu.dot_dimension_numbers<[1], [0], [0], [1], [0, 0, 1, 1], [], []>} : vector<1x16xf32>, vector<16x256xf32>, vector<1x256xf32> -> vector<1x256xf32>
    %61 = vector.shape_cast %60 : vector<1x256xf32> to vector<1x1x256xf32>
    %62 = vector.broadcast %61 : vector<1x1x256xf32> to vector<1x4x256xf32>
    %63 = arith.mulf %0, %62 : vector<1x4x256xf32>
    %c0_36 = arith.constant 0 : index
    %c0_37 = arith.constant 0 : index
    %c0_38 = arith.constant 0 : index
    %64 = vector.load %arg8[%c0_36, %c0_37, %c0_38] : memref<1x4x256xf32, #tpu.memory_space<vmem>>, vector<1x4x256xf32>
    tpu.vector_store %arg8[%c0_36, %c0_37, %c0_38], %63 {strides = array<i32>} : memref<1x4x256xf32, #tpu.memory_space<vmem>>, vector<1x4x256xf32>,
    return
  }
  func.func @transform_0(%arg0: i32) -> (i32, i32, i32) {
    %c0_i32 = arith.constant 0 : i32
    %c0_i32_0 = arith.constant 0 : i32
    %c0_i32_1 = arith.constant 0 : i32
    return %arg0, %c0_i32, %c0_i32_0 : i32, i32, i32
  }
  func.func @transform_1(%arg0: i32) -> (i32, i32) {
    %c0_i32 = arith.constant 0 : i32
    %c0_i32_0 = arith.constant 0 : i32
    %c0_i32_1 = arith.constant 0 : i32
    return %c0_i32, %c0_i32_0 : i32, i32
  }
  func.func @transform_2(%arg0: i32) -> (i32, i32) {
    %c0_i32 = arith.constant 0 : i32
    %c0_i32_0 = arith.constant 0 : i32
    %c0_i32_1 = arith.constant 0 : i32
    return %c0_i32, %c0_i32_0 : i32, i32
  }
  func.func @transform_3(%arg0: i32) -> (i32, i32) {
    %c0_i32 = arith.constant 0 : i32
    %c0_i32_0 = arith.constant 0 : i32
    %c0_i32_1 = arith.constant 0 : i32
    return %c0_i32, %c0_i32_0 : i32, i32
  }
  func.func @transform_4(%arg0: i32) -> (i32, i32) {
    %c0_i32 = arith.constant 0 : i32
    %c0_i32_0 = arith.constant 0 : i32
    %c0_i32_1 = arith.constant 0 : i32
    return %c0_i32, %c0_i32_0 : i32, i32
  }
  func.func @transform_5(%arg0: i32) -> (i32, i32) {
    %c0_i32 = arith.constant 0 : i32
    %c0_i32_0 = arith.constant 0 : i32
    %c0_i32_1 = arith.constant 0 : i32
    return %c0_i32, %c0_i32_0 : i32, i32
  }
  func.func @transform_6(%arg0: i32) -> (i32, i32) {
    %c0_i32 = arith.constant 0 : i32
    %c0_i32_0 = arith.constant 0 : i32
    %c0_i32_1 = arith.constant 0 : i32
    return %c0_i32, %c0_i32_0 : i32, i32
  }
  func.func @transform_7(%arg0: i32) -> (i32, i32, i32) {
    %c0_i32 = arith.constant 0 : i32
    %c0_i32_0 = arith.constant 0 : i32
    %c0_i32_1 = arith.constant 0 : i32
    return %arg0, %c0_i32, %c0_i32_0 : i32, i32, i32
  }
}

</mosaic_0001>

<llo_original>
// kernel: fwse_module.1
$region0: #{fwse_module.1}
  #allocation0 [shape = 'u32[]', space=smem, size = 0x4, offset = 0x4, fixed_abs, tag = 'smem constant byte address 0x4 - core index']
  #allocation1 [shape = 'u32[144,128]{1,0:T(1,128)}', space=vmem, size = 0x12000, scoped, tag = 'internal scratch']
  %s0 = inlined_call_operand.vmem [shape: f32[2,4,256], index: 0, kind: input, shape index: {}]
  %s1 = inlined_call_operand.vmem [shape: f32[256,16], index: 1, kind: input, shape index: {}]
  %s2 = inlined_call_operand.vmem [shape: f32[16,8], index: 2, kind: input, shape index: {}]
  %s3 = inlined_call_operand.vmem [shape: f32[1,8], index: 3, kind: input, shape index: {}]
  %s4 = inlined_call_operand.vmem [shape: f32[8,16], index: 4, kind: input, shape index: {}]
  %s5 = inlined_call_operand.vmem [shape: f32[1,16], index: 5, kind: input, shape index: {}]
  %s6 = inlined_call_operand.vmem [shape: f32[16,256], index: 6, kind: input, shape index: {}]
  %s7 = inlined_call_operand.vmem [shape: f32[2,4,256], index: 7, kind: output, shape index: {}]
  %s8 = sld [smem:[#allocation0]]
  $region61: #{fwse_module.1} parent=0
    _
  %s10 = ssub.s32 1, %s8
  %s11 = scalar_select 0, %s10, %s8
  loop: start=0, step=1, limit=4
  $region2: #{fwse_module.1} parent=0 // loop_pre_header
    _
  $region3: #{fwse_module.1} parent=0 // loop_header
    %s13 = sphi 0, %s17
    %p14 = scmp.ge.s32.totalorder %s13, 4
    %s23 = sphi 0, %s25
    %s26 = sphi 0, %s23
    %s27 = sphi 0, %s26
    %s43 = sphi 0, %s27
    %s47 = sphi 0, %s47
    %s49 = sphi 0, %s47
    %s50 = sphi 0, %s49
    %s64 = sphi 0, %s50
    %s68 = sphi 0, %s68
    %s70 = sphi 0, %s68
    %s71 = sphi 0, %s70
    %s85 = sphi 0, %s71
    %s89 = sphi 0, %s89
    %s91 = sphi 0, %s89
    %s92 = sphi 0, %s91
    %s106 = sphi 0, %s92
    %s110 = sphi 0, %s110
    %s112 = sphi 0, %s110
    %s113 = sphi 0, %s112
    %s127 = sphi 0, %s113
    %s131 = sphi 0, %s131
    %s133 = sphi 0, %s131
    %s134 = sphi 0, %s133
    %s148 = sphi 0, %s134
    %s152 = sphi 0, %s152
    %s154 = sphi 0, %s152
    %s155 = sphi 0, %s154
    %s169 = sphi 0, %s155
    %s175 = sphi 0, %s177
    %s178 = sphi 0, %s175
    %s179 = sphi 0, %s178
    %s195 = sphi 0, %s179
  $region4: #{fwse_module.1} parent=0 // loop_header_branch
    %16 = sbr.rel (%p14) target = $region8
  $region5: #{fwse_module.1} parent=0 // loop_body
    %s18 = ssub.s32 %s13, 1
    %s19 = ssub.s32 %s13, 2
    %s20 = sadd.s32 %s13, 1
    %s21 = ssub.s32 %s13, %s20
    %p22 = scmp.eq.s32.totalorder %s21, 0
    %s24 = sadd.s32 %s23, 1
    %s25 = scalar_select %p22, %s23, %s24
    %p28 = pneg %p22
    %p29 = scmp.eq.s32.totalorder %s13, 1
    %p30 = por %p28, %p29
    %p31 = scmp.ne.s32.totalorder %s23, %s26
    %p32 = scmp.eq.s32.totalorder %s13, 0
    %p33 = por %p31, %p32
    %p34 = scmp.ne.s32.totalorder %s23, %s26
    %p35 = scmp.eq.s32.totalorder %s18, 1
    %p36 = por %p34, %p35
    %p37 = scmp.ne.s32.totalorder %s26, %s27
    %p38 = scmp.eq.s32.totalorder %s18, 0
    %p39 = por %p37, %p38
    %p40 = scmp.ne.s32.totalorder %s26, %s27
    %p41 = scmp.eq.s32.totalorder %s19, 1
    %p42 = por %p40, %p41
    %p44 = scmp.ne.s32.totalorder %s27, %s43
    %p45 = scmp.eq.s32.totalorder %s19, 0
    %p46 = por %p44, %p45
    %s48 = sadd.s32 %s47, 1
    %p51 = scmp.eq.s32.totalorder %s13, 1
    %p52 = scmp.ne.s32.totalorder %s47, %s49
    %p53 = scmp.eq.s32.totalorder %s13, 0
    %p54 = por %p52, %p53
    %p55 = scmp.ne.s32.totalorder %s47, %s49
    %p56 = scmp.eq.s32.totalorder %s18, 1
    %p57 = por %p55, %p56
    %p58 = scmp.ne.s32.totalorder %s49, %s50
    %p59 = scmp.eq.s32.totalorder %s18, 0
    %p60 = por %p58, %p59
    %p61 = scmp.ne.s32.totalorder %s49, %s50
    %p62 = scmp.eq.s32.totalorder %s19, 1
    %p63 = por %p61, %p62
    %p65 = scmp.ne.s32.totalorder %s50, %s64
    %p66 = scmp.eq.s32.totalorder %s19, 0
    %p67 = por %p65, %p66
    %s69 = sadd.s32 %s68, 1
    %p72 = scmp.eq.s32.totalorder %s13, 1
    %p73 = scmp.ne.s32.totalorder %s68, %s70
    %p74 = scmp.eq.s32.totalorder %s13, 0
    %p75 = por %p73, %p74
    %p76 = scmp.ne.s32.totalorder %s68, %s70
    %p77 = scmp.eq.s32.totalorder %s18, 1
    %p78 = por %p76, %p77
    %p79 = scmp.ne.s32.totalorder %s70, %s71
    %p80 = scmp.eq.s32.totalorder %s18, 0
    %p81 = por %p79, %p80
    %p82 = scmp.ne.s32.totalorder %s70, %s71
    %p83 = scmp.eq.s32.totalorder %s19, 1
    %p84 = por %p82, %p83
    %p86 = scmp.ne.s32.totalorder %s71, %s85
    %p87 = scmp.eq.s32.totalorder %s19, 0
    %p88 = por %p86, %p87
    %s90 = sadd.s32 %s89, 1
    %p93 = scmp.eq.s32.totalorder %s13, 1
    %p94 = scmp.ne.s32.totalorder %s89, %s91
    %p95 = scmp.eq.s32.totalorder %s13, 0
    %p96 = por %p94, %p95
    %p97 = scmp.ne.s32.totalorder %s89, %s91
    %p98 = scmp.eq.s32.totalorder %s18, 1
    %p99 = por %p97, %p98
    %p100 = scmp.ne.s32.totalorder %s91, %s92
    %p101 = scmp.eq.s32.totalorder %s18, 0
    %p102 = por %p100, %p101
    %p103 = scmp.ne.s32.totalorder %s91, %s92
    %p104 = scmp.eq.s32.totalorder %s19, 1
    %p105 = por %p103, %p104
    %p107 = scmp.ne.s32.totalorder %s92, %s106
    %p108 = scmp.eq.s32.totalorder %s19, 0
    %p109 = por %p107, %p108
    %s111 = sadd.s32 %s110, 1
    %p114 = scmp.eq.s32.totalorder %s13, 1
    %p115 = scmp.ne.s32.totalorder %s110, %s112
    %p116 = scmp.eq.s32.totalorder %s13, 0
    %p117 = por %p115, %p116
    %p118 = scmp.ne.s32.totalorder %s110, %s112
    %p119 = scmp.eq.s32.totalorder %s18, 1
    %p120 = por %p118, %p119
    %p121 = scmp.ne.s32.totalorder %s112, %s113
    %p122 = scmp.eq.s32.totalorder %s18, 0
    %p123 = por %p121, %p122
    %p124 = scmp.ne.s32.totalorder %s112, %s113
    %p125 = scmp.eq.s32.totalorder %s19, 1
    %p126 = por %p124, %p125
    %p128 = scmp.ne.s32.totalorder %s113, %s127
    %p129 = scmp.eq.s32.totalorder %s19, 0
    %p130 = por %p128, %p129
    %s132 = sadd.s32 %s131, 1
    %p135 = scmp.eq.s32.totalorder %s13, 1
    %p136 = scmp.ne.s32.totalorder %s131, %s133
    %p137 = scmp.eq.s32.totalorder %s13, 0
    %p138 = por %p136, %p137
    %p139 = scmp.ne.s32.totalorder %s131, %s133
    %p140 = scmp.eq.s32.totalorder %s18, 1
    %p141 = por %p139, %p140
    %p142 = scmp.ne.s32.totalorder %s133, %s134
    %p143 = scmp.eq.s32.totalorder %s18, 0
    %p144 = por %p142, %p143
    %p145 = scmp.ne.s32.totalorder %s133, %s134
    %p146 = scmp.eq.s32.totalorder %s19, 1
    %p147 = por %p145, %p146
    %p149 = scmp.ne.s32.totalorder %s134, %s148
    %p150 = scmp.eq.s32.totalorder %s19, 0
    %p151 = por %p149, %p150
    %s153 = sadd.s32 %s152, 1
    %p156 = scmp.eq.s32.totalorder %s13, 1
    %p157 = scmp.ne.s32.totalorder %s152, %s154
    %p158 = scmp.eq.s32.totalorder %s13, 0
    %p159 = por %p157, %p158
    %p160 = scmp.ne.s32.totalorder %s152, %s154
    %p161 = scmp.eq.s32.totalorder %s18, 1
    %p162 = por %p160, %p161
    %p163 = scmp.ne.s32.totalorder %s154, %s155
    %p164 = scmp.eq.s32.totalorder %s18, 0
    %p165 = por %p163, %p164
    %p166 = scmp.ne.s32.totalorder %s154, %s155
    %p167 = scmp.eq.s32.totalorder %s19, 1
    %p168 = por %p166, %p167
    %p170 = scmp.ne.s32.totalorder %s155, %s169
    %p171 = scmp.eq.s32.totalorder %s19, 0
    %p172 = por %p170, %p171
    %s173 = ssub.s32 %s13, %s20
    %p174 = scmp.eq.s32.totalorder %s173, 0
    %s176 = sadd.s32 %s175, 1
    %s177 = scalar_select %p174, %s175, %s176
    %p180 = pneg %p174
    %p181 = scmp.eq.s32.totalorder %s13, 1
    %p182 = por %p180, %p181
    %p183 = scmp.ne.s32.totalorder %s175, %s178
    %p184 = scmp.eq.s32.totalorder %s13, 0
    %p185 = por %p183, %p184
    %p186 = scmp.ne.s32.totalorder %s175, %s178
    %p187 = scmp.eq.s32.totalorder %s18, 1
    %p188 = por %p186, %p187
    %p189 = scmp.ne.s32.totalorder %s178, %s179
    %p190 = scmp.eq.s32.totalorder %s18, 0
    %p191 = por %p189, %p190
    %p192 = scmp.ne.s32.totalorder %s178, %s179
    %p193 = scmp.eq.s32.totalorder %s19, 1
    %p194 = por %p192, %p193
    %p196 = scmp.ne.s32.totalorder %s179, %s195
    %p197 = scmp.eq.s32.totalorder %s19, 0
    %p198 = por %p196, %p197
    %p199 = scmp.le.s32.totalorder 1, %s13
    %p200 = scmp.lt.s32.totalorder %s13, 3
    %p201 = pnand %p199, %p200
    %p202 = pneg %p201
    // Predicated region
    $region9: #{fwse_module.1} parent=5 // pred_check
      _
    $region10: #{fwse_module.1} parent=5 // pred_check_branch
      %204 = sbr.rel (%p201) target = $region12
    $region11: #{fwse_module.1} parent=5 // pred_region
      %s205 = ssub.s32 %s13, 1
      // Predicated region
      $region13: #{fwse_module.1} parent=11 // pred_check
        %p206 = pneg %p60
      $region14: #{fwse_module.1} parent=11 // pred_check_branch
        %208 = sbr.rel (%p206) target = $region16
      $region15: #{fwse_module.1} parent=11 // pred_region
        _
      $region16: #{fwse_module.1} parent=11 // pred_fallthru
        _
      // Predicated region
      $region17: #{fwse_module.1} parent=11 // pred_check
        %p209 = pneg %p81
      $region18: #{fwse_module.1} parent=11 // pred_check_branch
        %211 = sbr.rel (%p209) target = $region20
      $region19: #{fwse_module.1} parent=11 // pred_region
        _
      $region20: #{fwse_module.1} parent=11 // pred_fallthru
        _
      // Predicated region
      $region21: #{fwse_module.1} parent=11 // pred_check
        %p212 = pneg %p102
      $region22: #{fwse_module.1} parent=11 // pred_check_branch
        %214 = sbr.rel (%p212) target = $region24
      $region23: #{fwse_module.1} parent=11 // pred_region
        _
      $region24: #{fwse_module.1} parent=11 // pred_fallthru
        _
      // Predicated region
      $region25: #{fwse_module.1} parent=11 // pred_check
        %p215 = pneg %p123
      $region26: #{fwse_module.1} parent=11 // pred_check_branch
        %217 = sbr.rel (%p215) target = $region28
      $region27: #{fwse_module.1} parent=11 // pred_region
        _
      $region28: #{fwse_module.1} parent=11 // pred_fallthru
        _
      // Predicated region
      $region29: #{fwse_module.1} parent=11 // pred_check
        %p218 = pneg %p144
      $region30: #{fwse_module.1} parent=11 // pred_check_branch
        %220 = sbr.rel (%p218) target = $region32
      $region31: #{fwse_module.1} parent=11 // pred_region
        _
      $region32: #{fwse_module.1} parent=11 // pred_fallthru
        _
      // Predicated region
      $region33: #{fwse_module.1} parent=11 // pred_check
        %p221 = pneg %p165
      $region34: #{fwse_module.1} parent=11 // pred_check_branch
        %223 = sbr.rel (%p221) target = $region36
      $region35: #{fwse_module.1} parent=11 // pred_region
        _
      $region36: #{fwse_module.1} parent=11 // pred_fallthru
        _
    $region12: #{fwse_module.1} parent=5 // pred_fallthru
      _
    %p224 = scmp.lt.s32.totalorder %s13, 2
    // Predicated region
    $region37: #{fwse_module.1} parent=5 // pred_check
      %p225 = pneg %p224
    $region38: #{fwse_module.1} parent=5 // pred_check_branch
      %227 = sbr.rel (%p225) target = $region40
    $region39: #{fwse_module.1} parent=5 // pred_region
      // Predicated region
      $region41: #{fwse_module.1} parent=39 // pred_check
        %p228 = pneg %p33
      $region42: #{fwse_module.1} parent=39 // pred_check_branch
        %230 = sbr.rel (%p228) target = $region44
      $region43: #{fwse_module.1} parent=39 // pred_region
        %p231 = scmp.lt.s32.totalorder %s13, 1
        %s232 = scalar_select %p231, %s13, 1
        %s233 = smul.addr %s232, 2
        %s234 = smul.addr %s233, 4
        %s235 = scalar_lea.vmem %s0, %s234
      $region44: #{fwse_module.1} parent=39 // pred_fallthru
        _
    $region40: #{fwse_module.1} parent=5 // pred_fallthru
      _
    %p236 = scmp.le.s32.totalorder 1, %s13
    %p237 = scmp.lt.s32.totalorder %s13, 3
    %p238 = pnand %p236, %p237
    %p239 = pneg %p238
    // Predicated region
    $region45: #{fwse_module.1} parent=5 // pred_check
      _
    $region46: #{fwse_module.1} parent=5 // pred_check_branch
      %241 = sbr.rel (%p238) target = $region48
    $region47: #{fwse_module.1} parent=5 // pred_region
      %s242 = ssub.s32 %s13, 1
      %p243 = scmp.lt.s32.totalorder %s18, 1
      %s244 = scalar_select %p243, %s18, 1
      %s245 = smul.addr %s244, 2
      %s246 = smul.addr %s245, 4
      %s247 = scalar_lea.vmem %s0, %s246
      %p248 = pneg %p39
      %p249 = pneg %p36
      %p250 = pneg %p60
      %p251 = pneg %p57
      %p252 = pneg %p81
      %p253 = pneg %p78
      %p254 = pneg %p102
      %p255 = pneg %p99
      %p256 = pneg %p123
      %p257 = pneg %p120
      %p258 = pneg %p144
      %p259 = pneg %p141
      %p260 = pneg %p165
      %p261 = pneg %p162
      %p262 = pneg %p191
      %p263 = pneg %p188
      %p264 = scmp.lt.s32.totalorder %s18, 1
      %s265 = scalar_select %p264, %s18, 1
      %s266 = smul.addr %s265, 2
      %s267 = smul.addr %s266, 4
      %s268 = scalar_lea.vmem %s7, %s267
      %p269 = scmp.lt.s32.totalorder %s18, 1
      %s270 = scalar_select %p269, %s18, 1
      %s271 = smul.addr %s270, 2
      %s272 = smul.addr %s271, 4
      %s273 = scalar_lea.vmem %s0, %s272
      %p274 = scmp.lt.s32.totalorder %s18, 1
      %s275 = scalar_select %p274, %s18, 1
      %s276 = smul.addr %s275, 2
      %s277 = smul.addr %s276, 4
      %s278 = scalar_lea.vmem %s7, %s277
      %v279 = vld [vmem:[%s273] sm:$0xff]
      %v281 = vcombine.high %v279, %v279
      %vm283 = vcmask 1043456
      %v284 = vsel %vm283, %v279, 0.0
      %v285 = vrot.slane %v284, 4
      %v286 = vadd.f32 %v284, %v285
      %v287 = vrot.slane %v286, 2
      %v288 = vadd.f32 %v286, %v287
      %v289 = vrot.slane %v288, 1
      %v290 = vadd.f32 %v288, %v289
      %v291 = vsel %vm283, %v281, 0.0
      %v292 = vrot.slane %v291, 4
      %v293 = vadd.f32 %v291, %v292
      %v294 = vrot.slane %v293, 2
      %v295 = vadd.f32 %v293, %v294
      %v296 = vrot.slane %v295, 1
      %v297 = vadd.f32 %v295, %v296
      %v298 = vld [vmem:[%s1] sm:$0xff]
      %v299 = vld [vmem:[%s1 + $0x8] sm:$0xff]
      %v300 = vld [vmem:[%s1 + $0x10] sm:$0xff]
      %v301 = vld [vmem:[%s1 + $0x18] sm:$0xff]
      %v302 = vld [vmem:[%s1 + $0x20] sm:$0xff]
      %v303 = vld [vmem:[%s1 + $0x28] sm:$0xff]
      %v304 = vld [vmem:[%s1 + $0x30] sm:$0xff]
      %v305 = vld [vmem:[%s1 + $0x38] sm:$0xff]
      %v306 = vld [vmem:[%s1 + $0x40] sm:$0xff]
      %v307 = vld [vmem:[%s1 + $0x48] sm:$0xff]
      %v308 = vld [vmem:[%s1 + $0x50] sm:$0xff]
      %v309 = vld [vmem:[%s1 + $0x58] sm:$0xff]
      %v310 = vld [vmem:[%s1 + $0x60] sm:$0xff]
      %v311 = vld [vmem:[%s1 + $0x68] sm:$0xff]
      %v312 = vld [vmem:[%s1 + $0x70] sm:$0xff]
      %v313 = vld [vmem:[%s1 + $0x78] sm:$0xff]
      %v314 = vld [vmem:[%s1 + $0x80] sm:$0xff]
      %v315 = vld [vmem:[%s1 + $0x88] sm:$0xff]
      %v316 = vld [vmem:[%s1 + $0x90] sm:$0xff]
      %v317 = vld [vmem:[%s1 + $0x98] sm:$0xff]
      %v318 = vld [vmem:[%s1 + $0xa0] sm:$0xff]
      %v319 = vld [vmem:[%s1 + $0xa8] sm:$0xff]
      %v320 = vld [vmem:[%s1 + $0xb0] sm:$0xff]
      %v321 = vld [vmem:[%s1 + $0xb8] sm:$0xff]
      %v322 = vld [vmem:[%s1 + $0xc0] sm:$0xff]
      %v323 = vld [vmem:[%s1 + $0xc8] sm:$0xff]
      %v324 = vld [vmem:[%s1 + $0xd0] sm:$0xff]
      %v325 = vld [vmem:[%s1 + $0xd8] sm:$0xff]
      %v326 = vld [vmem:[%s1 + $0xe0] sm:$0xff]
      %v327 = vld [vmem:[%s1 + $0xe8] sm:$0xff]
      %v328 = vld [vmem:[%s1 + $0xf0] sm:$0xff]
      %v329 = vld [vmem:[%s1 + $0xf8] sm:$0xff]
      %330 = vmatprep.subr.mxu0 0.0
      %331 = vmatpush1.msra.mxu0 %v298
      %332 = vmatprep.subr.mxu0 0.0
      %333 = vmatpush1.msra.mxu0 %v299
      %334 = vmatprep.subr.mxu0 0.0
      %335 = vmatpush1.msra.mxu0 %v300
      %336 = vmatprep.subr.mxu0 0.0
      %337 = vmatpush1.msra.mxu0 %v301
      %338 = vmatprep.subr.mxu0 0.0
      %339 = vmatpush1.msra.mxu0 %v302
      %340 = vmatprep.subr.mxu0 0.0
      %341 = vmatpush1.msra.mxu0 %v303
      %342 = vmatprep.subr.mxu0 0.0
      %343 = vmatpush1.msra.mxu0 %v304
      %344 = vmatprep.subr.mxu0 0.0
      %345 = vmatpush1.msra.mxu0 %v305
      %346 = vmatprep.subr.mxu0 0.0
      %347 = vmatpush1.msra.mxu0 %v306
      %348 = vmatprep.subr.mxu0 0.0
      %349 = vmatpush1.msra.mxu0 %v307
      %350 = vmatprep.subr.mxu0 0.0
      %351 = vmatpush1.msra.mxu0 %v308
      %352 = vmatprep.subr.mxu0 0.0
      %353 = vmatpush1.msra.mxu0 %v309
      %354 = vmatprep.subr.mxu0 0.0
      %355 = vmatpush1.msra.mxu0 %v310
      %356 = vmatprep.subr.mxu0 0.0
      %357 = vmatpush1.msra.mxu0 %v311
      %358 = vmatprep.subr.mxu0 0.0
      %359 = vmatpush1.msra.mxu0 %v312
      %360 = vmatprep.subr.mxu0 0.0
      %361 = vmatpush1.msra.mxu0 %v313
      %362 = vmatprep.subr.mxu0 0.0
      %363 = vmatpush1.msra.mxu0 %v314
      %364 = vmatprep.subr.mxu0 0.0
      %365 = vmatpush1.msra.mxu0 %v315
      %366 = vmatprep.subr.mxu0 0.0
      %367 = vmatpush1.msra.mxu0 %v316
      %368 = vmatprep.subr.mxu0 0.0
      %369 = vmatpush1.msra.mxu0 %v317
      %370 = vmatprep.subr.mxu0 0.0
      %371 = vmatpush1.msra.mxu0 %v318
      %372 = vmatprep.subr.mxu0 0.0
      %373 = vmatpush1.msra.mxu0 %v319
      %374 = vmatprep.subr.mxu0 0.0
      %375 = vmatpush1.msra.mxu0 %v320
      %376 = vmatprep.subr.mxu0 0.0
      %377 = vmatpush1.msra.mxu0 %v321
      %378 = vmatprep.subr.mxu0 0.0
      %379 = vmatpush1.msra.mxu0 %v322
      %380 = vmatprep.subr.mxu0 0.0
      %381 = vmatpush1.msra.mxu0 %v323
      %382 = vmatprep.subr.mxu0 0.0
      %383 = vmatpush1.msra.mxu0 %v324
      %384 = vmatprep.subr.mxu0 0.0
      %385 = vmatpush1.msra.mxu0 %v325
      %386 = vmatprep.subr.mxu0 0.0
      %387 = vmatpush1.msra.mxu0 %v326
      %388 = vmatprep.subr.mxu0 0.0
      %389 = vmatpush1.msra.mxu0 %v327
      %390 = vmatprep.subr.mxu0 0.0
      %391 = vmatpush1.msra.mxu0 %v328
      %392 = vmatprep.subr.mxu0 0.0
      %393 = vmatpush1.msra.mxu0 %v329
      %394 = vmatprep.mubr.f32.mxu0 %v297
      %395 = vmatmul.mubr.f32.gmra.mrb[0].mxu0 %v290
      %v396 = vpop.f32.mrb[0].mxu0
      %v397 = vadd.f32 0.0, %v396
      %v398 = vpop.f32.mrb[0].mxu0
      %399 = vdwg.mxu0
      %v400 = vld [vmem:[%s2] sm:$0xff]
      %v401 = vld [vmem:[%s2 + $0x8] sm:$0xff]
      %v402 = vld [vmem:[%s3] sm:$0x1]
      %vm403 = vcmask 130048
      %v405 = vsel %vm403, %v397, 0
      %407 = vmatprep.subr.mxu0 0.0
      %408 = vmatpush1.msra.mxu0 %v400
      %409 = vmatprep.subr.mxu0 0.0
      %410 = vmatpush1.msra.mxu0 %v401
      %411 = vmatprep.subr.mxu0 0.0
      %412 = vmatpush1.msra.mxu0 0.0
      %413 = vmatprep.subr.mxu0 0.0
      %414 = vmatpush1.msra.mxu0 0.0
      %415 = vmatprep.subr.mxu0 0.0
      %416 = vmatpush1.msra.mxu0 0.0
      %417 = vmatprep.subr.mxu0 0.0
      %418 = vmatpush1.msra.mxu0 0.0
      %419 = vmatprep.subr.mxu0 0.0
      %420 = vmatpush1.msra.mxu0 0.0
      %421 = vmatprep.subr.mxu0 0.0
      %422 = vmatpush1.msra.mxu0 0.0
      %423 = vmatprep.subr.mxu0 0.0
      %424 = vmatpush1.msra.mxu0 0.0
      %425 = vmatprep.subr.mxu0 0.0
      %426 = vmatpush1.msra.mxu0 0.0
      %427 = vmatprep.subr.mxu0 0.0
      %428 = vmatpush1.msra.mxu0 0.0
      %429 = vmatprep.subr.mxu0 0.0
      %430 = vmatpush1.msra.mxu0 0.0
      %431 = vmatprep.subr.mxu0 0.0
      %432 = vmatpush1.msra.mxu0 0.0
      %433 = vmatprep.subr.mxu0 0.0
      %434 = vmatpush1.msra.mxu0 0.0
      %435 = vmatprep.subr.mxu0 0.0
      %436 = vmatpush1.msra.mxu0 0.0
      %437 = vmatprep.subr.mxu0 0.0
      %438 = vmatpush1.msra.mxu0 0.0
      %439 = vmatprep.subr.mxu0 0.0
      %440 = vmatpush1.msra.mxu0 0.0
      %441 = vmatprep.subr.mxu0 0.0
      %442 = vmatpush1.msra.mxu0 0.0
      %443 = vmatprep.subr.mxu0 0.0
      %444 = vmatpush1.msra.mxu0 0.0
      %445 = vmatprep.subr.mxu0 0.0
      %446 = vmatpush1.msra.mxu0 0.0
      %447 = vmatprep.subr.mxu0 0.0
      %448 = vmatpush1.msra.mxu0 0.0
      %449 = vmatprep.subr.mxu0 0.0
      %450 = vmatpush1.msra.mxu0 0.0
      %451 = vmatprep.subr.mxu0 0.0
      %452 = vmatpush1.msra.mxu0 0.0
      %453 = vmatprep.subr.mxu0 0.0
      %454 = vmatpush1.msra.mxu0 0.0
      %455 = vmatprep.subr.mxu0 0.0
      %456 = vmatpush1.msra.mxu0 0.0
      %457 = vmatprep.subr.mxu0 0.0
      %458 = vmatpush1.msra.mxu0 0.0
      %459 = vmatprep.subr.mxu0 0.0
      %460 = vmatpush1.msra.mxu0 0.0
      %461 = vmatprep.subr.mxu0 0.0
      %462 = vmatpush1.msra.mxu0 0.0
      %463 = vmatprep.subr.mxu0 0.0
      %464 = vmatpush1.msra.mxu0 0.0
      %465 = vmatprep.subr.mxu0 0.0
      %466 = vmatpush1.msra.mxu0 0.0
      %467 = vmatprep.subr.mxu0 0.0
      %468 = vmatpush1.msra.mxu0 0.0
      %469 = vmatprep.subr.mxu0 0.0
      %470 = vmatpush1.msra.mxu0 0.0
      %471 = vmatprep.mubr.f32.mxu0 0.0
      %472 = vmatmul.mubr.f32.gmra.mrb[0].mxu0 %v405
      %v473 = vpop.f32.mrb[0].mxu0
      %v474 = vadd.f32 %v402, %v473
      %v475 = vpop.f32.mrb[0].mxu0
      %476 = vdwg.mxu0
      %v477 = vmul.f32 %v474, 0.5
      %v478 = vmul.f32 %v474, 0.70710677
      %v479 = vand.u32 2147483647, %v478
      %v480 = vmul.f32 %v479, 0.3275911
      %v481 = vadd.f32 %v480, 1.0
      %v482 = vrcp.pop %v481
      %v483 = vmul.f32 1.0, %v482
      %v484 = vmul.f32 %v483, 1.0614054
      %v485 = vadd.f32 %v484, -1.4531521
      %v486 = vmul.f32 %v485, %v483
      %v487 = vadd.f32 %v486, 1.4214138
      %v488 = vmul.f32 %v487, %v483
      %v489 = vadd.f32 %v488, -0.28449672
      %v490 = vmul.f32 %v489, %v483
      %v491 = vadd.f32 %v490, 0.2548296
      %v492 = vmul.f32 %v491, %v483
      %v493 = vmul.f32 %v479, %v479
      %v494 = vsub.f32 0.0, %v493
      %v495 = vmul.f32 %v494, 1.442695
      %v496 = vpow.pop %v495
      %v497 = vmul.f32 %v492, %v496
      %v498 = vsub.f32 1.0, %v497
      %vm499 = vcmp.lt.f32.partialorder %v478, 0.0
      %v500 = vsub.f32 0.0, %v498
      %v501 = vsel %vm499, %v500, %v498
      %v502 = vadd.f32 %v501, 1.0
      %v503 = vmul.f32 %v477, %v502
      %v504 = vld [vmem:[%s4] sm:$0xff]
      %v505 = vld [vmem:[%s5] sm:$0x1]
      %vm506 = vcmask 64512
      %v508 = vsel %vm506, %v503, 0
      %510 = vmatprep.subr.mxu0 0.0
      %511 = vmatpush1.msra.mxu0 %v504
      %512 = vmatprep.subr.mxu0 0.0
      %513 = vmatpush1.msra.mxu0 0.0
      %514 = vmatprep.subr.mxu0 0.0
      %515 = vmatpush1.msra.mxu0 0.0
      %516 = vmatprep.subr.mxu0 0.0
      %517 = vmatpush1.msra.mxu0 0.0
      %518 = vmatprep.subr.mxu0 0.0
      %519 = vmatpush1.msra.mxu0 0.0
      %520 = vmatprep.subr.mxu0 0.0
      %521 = vmatpush1.msra.mxu0 0.0
      %522 = vmatprep.subr.mxu0 0.0
      %523 = vmatpush1.msra.mxu0 0.0
      %524 = vmatprep.subr.mxu0 0.0
      %525 = vmatpush1.msra.mxu0 0.0
      %526 = vmatprep.subr.mxu0 0.0
      %527 = vmatpush1.msra.mxu0 0.0
      %528 = vmatprep.subr.mxu0 0.0
      %529 = vmatpush1.msra.mxu0 0.0
      %530 = vmatprep.subr.mxu0 0.0
      %531 = vmatpush1.msra.mxu0 0.0
      %532 = vmatprep.subr.mxu0 0.0
      %533 = vmatpush1.msra.mxu0 0.0
      %534 = vmatprep.subr.mxu0 0.0
      %535 = vmatpush1.msra.mxu0 0.0
      %536 = vmatprep.subr.mxu0 0.0
      %537 = vmatpush1.msra.mxu0 0.0
      %538 = vmatprep.subr.mxu0 0.0
      %539 = vmatpush1.msra.mxu0 0.0
      %540 = vmatprep.subr.mxu0 0.0
      %541 = vmatpush1.msra.mxu0 0.0
      %542 = vmatprep.subr.mxu0 0.0
      %543 = vmatpush1.msra.mxu0 0.0
      %544 = vmatprep.subr.mxu0 0.0
      %545 = vmatpush1.msra.mxu0 0.0
      %546 = vmatprep.subr.mxu0 0.0
      %547 = vmatpush1.msra.mxu0 0.0
      %548 = vmatprep.subr.mxu0 0.0
      %549 = vmatpush1.msra.mxu0 0.0
      %550 = vmatprep.subr.mxu0 0.0
      %551 = vmatpush1.msra.mxu0 0.0
      %552 = vmatprep.subr.mxu0 0.0
      %553 = vmatpush1.msra.mxu0 0.0
      %554 = vmatprep.subr.mxu0 0.0
      %555 = vmatpush1.msra.mxu0 0.0
      %556 = vmatprep.subr.mxu0 0.0
      %557 = vmatpush1.msra.mxu0 0.0
      %558 = vmatprep.subr.mxu0 0.0
      %559 = vmatpush1.msra.mxu0 0.0
      %560 = vmatprep.subr.mxu0 0.0
      %561 = vmatpush1.msra.mxu0 0.0
      %562 = vmatprep.subr.mxu0 0.0
      %563 = vmatpush1.msra.mxu0 0.0
      %564 = vmatprep.subr.mxu0 0.0
      %565 = vmatpush1.msra.mxu0 0.0
      %566 = vmatprep.subr.mxu0 0.0
      %567 = vmatpush1.msra.mxu0 0.0
      %568 = vmatprep.subr.mxu0 0.0
      %569 = vmatpush1.msra.mxu0 0.0
      %570 = vmatprep.subr.mxu0 0.0
      %571 = vmatpush1.msra.mxu0 0.0
      %572 = vmatprep.subr.mxu0 0.0
      %573 = vmatpush1.msra.mxu0 0.0
      %574 = vmatprep.mubr.f32.mxu0 0.0
      %575 = vmatmul.mubr.f32.gmra.mrb[0].mxu0 %v508
      %v576 = vpop.f32.mrb[0].mxu0
      %v577 = vadd.f32 %v505, %v576
      %v578 = vpop.f32.mrb[0].mxu0
      %579 = vdwg.mxu0
      %v580 = vsub.f32 0.0, %v577
      %v581 = vmul.f32 %v580, 1.442695
      %v582 = vpow.pop %v581
      %v583 = vadd.f32 %v582, 1.0
      %v584 = vrcp.pop %v583
      %v585 = vmul.f32 1.0, %v584
      %v586 = vld [vmem:[%s6] sm:$0xff]
      %v587 = vld [vmem:[%s6 + $0x8] sm:$0xff]
      %v588 = vld [vmem:[%s6 + $0x10] sm:$0xff]
      %v589 = vld [vmem:[%s6 + $0x18] sm:$0xff]
      %v591 = vsel %vm403, %v585, 0
      %593 = vmatprep.subr.mxu0 %v587
      %594 = vmatpush1.msra.mxu0 %v586
      %595 = vmatprep.subr.mxu0 %v589
      %596 = vmatpush1.msra.mxu0 %v588
      %597 = vmatprep.subr.mxu0 0.0
      %598 = vmatpush1.msra.mxu0 0.0
      %599 = vmatprep.subr.mxu0 0.0
      %600 = vmatpush1.msra.mxu0 0.0
      %601 = vmatprep.subr.mxu0 0.0
      %602 = vmatpush1.msra.mxu0 0.0
      %603 = vmatprep.subr.mxu0 0.0
      %604 = vmatpush1.msra.mxu0 0.0
      %605 = vmatprep.subr.mxu0 0.0
      %606 = vmatpush1.msra.mxu0 0.0
      %607 = vmatprep.subr.mxu0 0.0
      %608 = vmatpush1.msra.mxu0 0.0
      %609 = vmatprep.subr.mxu0 0.0
      %610 = vmatpush1.msra.mxu0 0.0
      %611 = vmatprep.subr.mxu0 0.0
      %612 = vmatpush1.msra.mxu0 0.0
      %613 = vmatprep.subr.mxu0 0.0
      %614 = vmatpush1.msra.mxu0 0.0
      %615 = vmatprep.subr.mxu0 0.0
      %616 = vmatpush1.msra.mxu0 0.0
      %617 = vmatprep.subr.mxu0 0.0
      %618 = vmatpush1.msra.mxu0 0.0
      %619 = vmatprep.subr.mxu0 0.0
      %620 = vmatpush1.msra.mxu0 0.0
      %621 = vmatprep.subr.mxu0 0.0
      %622 = vmatpush1.msra.mxu0 0.0
      %623 = vmatprep.subr.mxu0 0.0
      %624 = vmatpush1.msra.mxu0 0.0
      %625 = vmatprep.subr.mxu0 0.0
      %626 = vmatpush1.msra.mxu0 0.0
      %627 = vmatprep.subr.mxu0 0.0
      %628 = vmatpush1.msra.mxu0 0.0
      %629 = vmatprep.subr.mxu0 0.0
      %630 = vmatpush1.msra.mxu0 0.0
      %631 = vmatprep.subr.mxu0 0.0
      %632 = vmatpush1.msra.mxu0 0.0
      %633 = vmatprep.subr.mxu0 0.0
      %634 = vmatpush1.msra.mxu0 0.0
      %635 = vmatprep.subr.mxu0 0.0
      %636 = vmatpush1.msra.mxu0 0.0
      %637 = vmatprep.subr.mxu0 0.0
      %638 = vmatpush1.msra.mxu0 0.0
      %639 = vmatprep.subr.mxu0 0.0
      %640 = vmatpush1.msra.mxu0 0.0
      %641 = vmatprep.subr.mxu0 0.0
      %642 = vmatpush1.msra.mxu0 0.0
      %643 = vmatprep.subr.mxu0 0.0
      %644 = vmatpush1.msra.mxu0 0.0
      %645 = vmatprep.subr.mxu0 0.0
      %646 = vmatpush1.msra.mxu0 0.0
      %647 = vmatprep.subr.mxu0 0.0
      %648 = vmatpush1.msra.mxu0 0.0
      %649 = vmatprep.subr.mxu0 0.0
      %650 = vmatpush1.msra.mxu0 0.0
      %651 = vmatprep.subr.mxu0 0.0
      %652 = vmatpush1.msra.mxu0 0.0
      %653 = vmatprep.subr.mxu0 0.0
      %654 = vmatpush1.msra.mxu0 0.0
      %655 = vmatprep.subr.mxu0 0.0
      %656 = vmatpush1.msra.mxu0 0.0
      %657 = vmatprep.mubr.f32.mxu0 0.0
      %658 = vmatmul.mubr.f32.gmra.mrb[0].mxu0 %v591
      %v659 = vpop.f32.mrb[0].mxu0
      %v660 = vadd.f32 0.0, %v659
      %v661 = vpop.f32.mrb[0].mxu0
      %v662 = vadd.f32 0.0, %v661
      %663 = vdwg.mxu0
      %v664 = vlaneseq
      %v665 = vshrl.u32 %v664, 7
      %v666 = vsub.s32 0, %v665
      %v667 = vrot.slane %v660, %v666
      %v668 = vlaneseq
      %v669 = vshrl.u32 %v668, 7
      %v670 = vsub.s32 0, %v669
      %v671 = vrot.slane %v662, %v670
      %v674 = vcombine.low %v667, %v671
      %v676 = vmul.f32 %v279, %v674
      %677 = vst [vmem:[%s278] sm:$0xff] %v676
      %p678 = scmp.lt.s32.totalorder %s18, 1
      %s679 = scalar_select %p678, %s18, 1
      %s680 = smul.addr %s679, 2
      %s681 = smul.addr %s680, 4
      %s682 = scalar_lea.vmem %s7, %s681
      // Predicated region
      $region49: #{fwse_module.1} parent=47 // pred_check
        %p683 = pneg %p188
      $region50: #{fwse_module.1} parent=47 // pred_check_branch
        %685 = sbr.rel (%p683) target = $region52
      $region51: #{fwse_module.1} parent=47 // pred_region
        _
      $region52: #{fwse_module.1} parent=47 // pred_fallthru
        _
    $region48: #{fwse_module.1} parent=5 // pred_fallthru
      _
    %p686 = scmp.le.s32.totalorder 2, %s13
    // Predicated region
    $region53: #{fwse_module.1} parent=5 // pred_check
      %p687 = pneg %p686
    $region54: #{fwse_module.1} parent=5 // pred_check_branch
      %689 = sbr.rel (%p687) target = $region56
    $region55: #{fwse_module.1} parent=5 // pred_region
      %s690 = ssub.s32 %s13, 2
      // Predicated region
      $region57: #{fwse_module.1} parent=55 // pred_check
        %p691 = pneg %p194
      $region58: #{fwse_module.1} parent=55 // pred_check_branch
        %693 = sbr.rel (%p691) target = $region60
      $region59: #{fwse_module.1} parent=55 // pred_region
        %p694 = scmp.lt.s32.totalorder %s19, 1
        %s695 = scalar_select %p694, %s19, 1
        %s696 = smul.addr %s695, 2
        %s697 = smul.addr %s696, 4
        %s698 = scalar_lea.vmem %s7, %s697
      $region60: #{fwse_module.1} parent=55 // pred_fallthru
        _
    $region56: #{fwse_module.1} parent=5 // pred_fallthru
      _
  $region6: #{fwse_module.1} parent=0 // loop_footer
    %s17 = sadd.s32 1, %s13
  $region7: #{fwse_module.1} parent=0 // loop_footer_branch
    %12 = sbr.rel target = $region3
  $region8: #{fwse_module.1} parent=0 // loop_exit
    _

</llo_original>
